<compile_context>
chip_gen: v5e
topology: v5e:2x2
jax: 0.10.0
libtpu: 0.0.40
codegen_flags: <defaults>
</compile_context>

<pallas_src>
import functools
import math

import jax
import jax.numpy as jnp
from jax import lax
from jax.experimental import pallas as pl
from jax.experimental.pallas import tpu as pltpu


def _round_up(a, b):
    return ((a + b - 1) // b) * b


def _build_shifted_strips(table, max_rel_pos, length, lq_pad, lk_pad):
    """Build SS (8, Wss_pad), dtype = table.dtype.

    SS[s, x] = T(x//D + 7 - s - P, x % D) where
      T(r, d) = table[clip(r - (L-1), -M, M) + M, d]   (valid for any int r)
      P = lq_pad - L.
    With that definition, output row i = 8*q + s, flat column c = j*D + d obeys
      out[i, c] = SS[s, (Qp - 1 - q)*8*D + c],
    i.e. every sublane group of the output is one contiguous window of SS.
    """
    v, d = table.shape
    m = max_rel_pos
    qp = lq_pad // 8
    p = lq_pad - length
    wss = (qp - 1) * 8 * d + lk_pad * d
    wss_pad = _round_up(max(wss, 128), 128)

    bias_rows = p + 8                         # row bias baked into flat_big
    n_rows = -(-(wss_pad + 15 * d) // d)      # ceil; covers max slice start 15*D
    rr = jnp.arange(n_rows, dtype=jnp.int32) - bias_rows
    idx = jnp.clip(rr - (length - 1), -m, m) + m          # always a valid row
    flat_big = table[idx].reshape(-1)                     # (n_rows * D,)
    # start_s = (7 - s - P + bias_rows) * D = (15 - s) * D   (independent of P)
    ss = jnp.stack([flat_big[(15 - s) * d:(15 - s) * d + wss_pad]
                    for s in range(8)])
    return ss                                              # (8, wss_pad)


def _relpos_copy_kernel(ss_ref, out_ref, *, gq, width, d8, qp, align):
    """Per (tq, tk*D) output block: each sublane group is one aligned SS window."""
    bi = pl.program_id(0)
    bj = pl.program_id(1)
    col0 = bj * width

    def body(g, carry):
        q = bi * gq + g                            # global sublane-group index
        start = (qp - 1 - q) * d8 + col0           # lane offset into SS
        if align > 1:
            start = pl.multiple_of(start, align)
        row0 = pl.multiple_of(g * 8, 8)
        out_ref[pl.ds(row0, 8), :] = ss_ref[:, pl.ds(start, width)]
        return carry

    lax.fori_loop(0, gq, body, 0, unroll=True)


def position_relative_symbol_retriever(x, rel_pos_embeddings, max_rel_pos,
                                       tq=None, tk=None):
    """Pallas equivalent of PositionRelativeSymbolRetriever.forward(x).

    x:                  (B, L, ...) -- only L = x.shape[1] is used.
    rel_pos_embeddings: (2*max_rel_pos + 1, symbol_dim) table.
    Returns:            (L, L, symbol_dim).
    """
    length = x.shape[1]
    v, d = rel_pos_embeddings.shape
    assert v == 2 * max_rel_pos + 1
    dtype = rel_pos_embeddings.dtype
    itemsize = jnp.dtype(dtype).itemsize

    # --- tile defaults from a VMEM budget (block ~<= 2 MiB, lane-aligned) ---
    lane_unit = 128 // math.gcd(d, 128)            # tk granule for tk*D % 128 == 0
    if tq is None:
        tq = min(_round_up(length, 8), 64)
    if tk is None:
        tk = min(_round_up(length, lane_unit),
                 _round_up(max(1, 8192 // d), lane_unit))
    assert tq % 8 == 0, "tq must be a multiple of 8 (sublane groups)"
    lq_pad = _round_up(length, tq)
    lk_pad = _round_up(length, tk)
    assert (tk * d) % 128 == 0 or tk == lk_pad, \
        "tk*D must be a multiple of 128 (or tk cover the whole padded row)"

    qp = lq_pad // 8
    gq = tq // 8
    width = tk * d
    d8 = 8 * d
    align = math.gcd(math.gcd(d8, width), 128)     # provable alignment of `start`

    ss = _build_shifted_strips(rel_pos_embeddings, max_rel_pos,
                               length, lq_pad, lk_pad)
    wss_pad = ss.shape[1]
    # TODO(synk): for very large L*D, tile SS along lanes instead of keeping the
    # whole (8, ~2*L*D) operand resident in VMEM.

    grid = (lq_pad // tq, lk_pad // tk)
    kernel = functools.partial(_relpos_copy_kernel,
                               gq=gq, width=width, d8=d8, qp=qp, align=align)

    out_bytes = lq_pad * lk_pad * d * itemsize
    ss_bytes = ss.size * itemsize
    block_bytes = tq * width * itemsize
    vmem_need = 2 * block_bytes + 2 * ss_bytes + (1 << 20)
    cost = pl.CostEstimate(flops=0, transcendentals=0,
                           bytes_accessed=out_bytes + ss_bytes)

    out2 = pl.pallas_call(
        kernel,
        out_shape=jax.ShapeDtypeStruct((lq_pad, lk_pad * d), dtype),
        grid_spec=pltpu.PrefetchScalarGridSpec(
            num_scalar_prefetch=0,
            grid=grid,
            in_specs=[
                # Whole SS resident in VMEM (constant block index -> fetched once).
                pl.BlockSpec((8, wss_pad), lambda i, j: (0, 0)),
            ],
            out_specs=pl.BlockSpec((tq, width), lambda i, j: (i, j)),
        ),
        compiler_params=pltpu.CompilerParams(
            dimension_semantics=("parallel", "parallel"),
            vmem_limit_bytes=int(max(vmem_need, 32 << 20)),
        ),
        cost_estimate=cost,
    )(ss)

    out = out2.reshape(lq_pad, lk_pad, d)          # free, lane-compatible reshape
    if lq_pad != length or lk_pad != length:
        out = out[:length, :length, :]
    return out


def _reference(x, rel_pos_embeddings, max_rel_pos):
    """Plain-JAX reference mirroring the PyTorch module."""
    length = x.shape[1]
    r = jnp.arange(length)
    dist = jnp.clip(r[None, :] - r[:, None], -max_rel_pos, max_rel_pos) + max_rel_pos
    return rel_pos_embeddings[dist]


if __name__ == "__main__":
    # ---- primary config: matches the PyTorch module at small shapes ----
    symbol_dim = 32
    max_rel_pos = 4
    v = 2 * max_rel_pos + 1
    batch, seq = 2, 8

    key = jax.random.PRNGKey(0)
    k_x, k_w, k_w2 = jax.random.split(key, 3)
    x = jax.random.normal(k_x, (batch, seq, symbol_dim), dtype=jnp.float32)

    # Deterministic xavier_uniform init of rel_pos_embeddings (V, symbol_dim).
    bound = (6.0 / (symbol_dim + v)) ** 0.5
    rel_pos_embeddings = jax.random.uniform(
        k_w, (v, symbol_dim), minval=-bound, maxval=bound, dtype=jnp.float32)

    out = position_relative_symbol_retriever(x, rel_pos_embeddings, max_rel_pos)
    out = jax.block_until_ready(out)
    ref = _reference(x, rel_pos_embeddings, max_rel_pos)
    assert out.shape == (seq, seq, symbol_dim)
    assert jnp.allclose(out, ref, atol=1e-6), "mismatch vs reference (primary)"

    # ---- second config: exercises padding (L not a tile multiple) + multi-tile grid ----
    seq2, m2 = 40, 3
    v2 = 2 * m2 + 1
    bound2 = (6.0 / (symbol_dim + v2)) ** 0.5
    table2 = jax.random.uniform(
        k_w2, (v2, symbol_dim), minval=-bound2, maxval=bound2, dtype=jnp.float32)
    x2 = jnp.zeros((batch, seq2, symbol_dim), dtype=jnp.float32)
    out2 = position_relative_symbol_retriever(x2, table2, m2, tq=16, tk=8)
    out2 = jax.block_until_ready(out2)
    ref2 = _reference(x2, table2, m2)
    assert out2.shape == (seq2, seq2, symbol_dim)
    assert jnp.allclose(out2, ref2, atol=1e-6), "mismatch vs reference (tiled/padded)"

    print("KERNEL_OK")
</pallas_src>

<mosaic_0001>
module attributes {stable_mosaic.version = 11 : i64} {
  func.func @_relpos_copy_kernel(%arg0: i32, %arg1: i32, %arg2: memref<8x256xf32, #tpu.memory_space<vmem>>, %arg3: memref<8x256xf32, #tpu.memory_space<vmem>>) attributes {dimension_semantics = [#tpu.dimension_semantics<parallel>, #tpu.dimension_semantics<parallel>], iteration_bounds = array<i64: 1, 1>, scalar_prefetch = 0 : i64, scratch_operands = 0 : i64, tpu.core_type = #tpu.core_type<tc>, window_params = [{pipeline_mode = #tpu.pipeline_mode<synchronous>, transform_indices = @transform_0, window_bounds = array<i64: 8, 256>}, {transform_indices = @transform_1, window_bounds = array<i64: 8, 256>}]} {
    %c256_i32 = arith.constant 256 : i32
    %0 = arith.muli %arg1, %c256_i32 : i32
    %c0_i32 = arith.constant 0 : i32
    %c1_i32 = arith.constant 1 : i32
    %1 = arith.muli %arg0, %c1_i32 : i32
    %2 = arith.addi %1, %c0_i32 : i32
    %c0_i32_0 = arith.constant 0 : i32
    %3 = arith.subi %c0_i32_0, %2 : i32
    %c256_i32_1 = arith.constant 256 : i32
    %4 = arith.muli %3, %c256_i32_1 : i32
    %5 = arith.addi %4, %0 : i32
    %6 = tpu.assume_multiple %5, 128 : i32
    %c8_i32 = arith.constant 8 : i32
    %7 = arith.muli %c0_i32, %c8_i32 : i32
    %8 = tpu.assume_multiple %7, 8 : i32
    %c0 = arith.constant 0 : index
    %9 = arith.index_cast %6 : i32 to index
    %10 = vector.load %arg2[%c0, %9] : memref<8x256xf32, #tpu.memory_space<vmem>>, vector<8x256xf32>
    %11 = arith.index_cast %8 : i32 to index
    %c0_2 = arith.constant 0 : index
    %12 = vector.load %arg3[%11, %c0_2] : memref<8x256xf32, #tpu.memory_space<vmem>>, vector<8x256xf32>
    tpu.vector_store %arg3[%11, %c0_2], %10 {strides = array<i32>} : memref<8x256xf32, #tpu.memory_space<vmem>>, vector<8x256xf32>,
    %c1_i32_3 = arith.constant 1 : i32
    return
  }
  func.func @transform_0(%arg0: i32, %arg1: i32) -> (i32, i32) {
    %c0_i32 = arith.constant 0 : i32
    %c0_i32_0 = arith.constant 0 : i32
    %c0_i32_1 = arith.constant 0 : i32
    return %c0_i32, %c0_i32_0 : i32, i32
  }
  func.func @transform_1(%arg0: i32, %arg1: i32) -> (i32, i32) {
    %c0_i32 = arith.constant 0 : i32
    return %arg0, %arg1 : i32, i32
  }
}

</mosaic_0001>

<llo_original>
// kernel: tpu_custom_call.1
$region0: #{tpu_custom_call.1}
  #allocation0 [shape = 'u32[]', space=smem, size = 0x4, offset = 0x4, fixed_abs, tag = 'smem constant byte address 0x4 - core index']
  #allocation1 [shape = 'u32[72,128]{1,0:T(1,128)}', space=vmem, size = 0x9000, scoped, tag = 'internal scratch']
  %s0 = inlined_call_operand.hbm [shape: f32[8,256], index: 0, kind: input, shape index: {}]
  %s1 = inlined_call_operand.hbm [shape: f32[8,256], index: 1, kind: output, shape index: {}]
  %s2 = sld [smem:[#allocation0]]
  $region18: #{tpu_custom_call.1} parent=0
    _
  %s4 = ssub.s32 1, %s2
  %s5 = scalar_select 0, %s4, %s2
  $region1: #{tpu_custom_call.1} parent=0
    #allocation2 [shape = 'u8[8192]{0}', space=vmem, size = 0x2000, scoped, tag = 'input window, operand 0, single buffered']
    #allocation3 [shape = 's32[1]{0}', space=sflag, size = 0x4, scoped, tag = 'scoped memory for tpu_custom_call.1']
    #allocation4 [shape = 's32[1]{0}', space=sflag, size = 0x4, scoped, tag = 'scoped memory for tpu_custom_call.1']
    #allocation5 [shape = 'u8[8192]{0}', space=vmem, size = 0x2000, scoped, tag = 'output window, operand 0, single buffered']
    %6 = vsyncpa [#allocation3], 0
    %7 = vsyncpa [#allocation4], 0
    // Predicated region
    $region2: #{tpu_custom_call.1} parent=1 // pred_check
      _
    $region3: #{tpu_custom_call.1} parent=1 // pred_check_branch
      %9 = sbr.rel (0) target = $region5
    $region4: #{tpu_custom_call.1} parent=1 // pred_region
      %11 = vsyncadd [#allocation3], 0
      %s13 = sshll.u32 %s0, 4
      %s14 = int_to_ptr.hbm [resolvable:$true] %s13
      %s15 = sshll.u32 [#allocation2], 4
      %s16 = int_to_ptr.vmem [resolvable:$true] %s15
      %18 = dma.hbm_to_vmem [thread:$0]  %s14, 256, %s16, [#allocation3]
    $region5: #{tpu_custom_call.1} parent=1 // pred_fallthru
      _
    // Predicated region
    $region6: #{tpu_custom_call.1} parent=1 // pred_check
      _
    $region7: #{tpu_custom_call.1} parent=1 // pred_check_branch
      %20 = sbr.rel (0) target = $region9
    $region8: #{tpu_custom_call.1} parent=1 // pred_region
      %22 = dma.done [#allocation3], 256
    $region9: #{tpu_custom_call.1} parent=1 // pred_fallthru
      _
    %s23 = smul.u32 0, 256
    %s24 = ssub.s32 0, 0
    %s25 = smul.u32 %s24, 256
    %s26 = sadd.s32 %s25, %s23
    %s27 = sshra.s32 %s26, 7
    %s28 = sand.u32 %s26, 127
    %s29 = smul.addr %s27, 8
    %s30 = scalar_lea.vmem [#allocation2], %s29
    %v31 = vld [vmem:[%s30] sm:$0xff]
    %v32 = vld [vmem:[%s30 + $0x8] sm:$0xff]
    %s33 = smul.u32 0, 2
    %s34 = smul.addr %s33, 8
    %s35 = scalar_lea.vmem [#allocation5], %s34
    %36 = vst [vmem:[%s35] sm:$0xff] %v31
    %37 = vst [vmem:[%s35 + $0x8] sm:$0xff] %v32
    // Predicated region
    $region10: #{tpu_custom_call.1} parent=1 // pred_check
      _
    $region11: #{tpu_custom_call.1} parent=1 // pred_check_branch
      %39 = sbr.rel (0) target = $region13
    $region12: #{tpu_custom_call.1} parent=1 // pred_region
      %41 = vsyncadd [#allocation4], 0
      %s43 = sshll.u32 [#allocation5], 4
      %s44 = int_to_ptr.vmem [resolvable:$true] %s43
      %s45 = sshll.u32 %s1, 4
      %s46 = int_to_ptr.hbm [resolvable:$true] %s45
      %48 = dma.vmem_to_hbm [thread:$0]  %s44, 256, %s46, [#allocation4]
    $region13: #{tpu_custom_call.1} parent=1 // pred_fallthru
      _
    // Predicated region
    $region14: #{tpu_custom_call.1} parent=1 // pred_check
      _
    $region15: #{tpu_custom_call.1} parent=1 // pred_check_branch
      %50 = sbr.rel (0) target = $region17
    $region16: #{tpu_custom_call.1} parent=1 // pred_region
      %52 = dma.done [#allocation4], 256
    $region17: #{tpu_custom_call.1} parent=1 // pred_fallthru
      _
    %53 = vsyncpa [#allocation3], 1
    %54 = vsyncpa [#allocation4], 1

</llo_original>
